<compile_context>
chip_gen: v7x
topology: tpu7x:2x2x1
jax: 0.10.0
libtpu: 0.0.40
codegen_flags: <defaults>
</compile_context>

<pallas_src>
import functools

import jax
import jax.numpy as jnp
from jax.experimental import pallas as pl
from jax.experimental.pallas import tpu as pltpu


def _textcnn_kernel(x_ref, wall_ref, bias_ref, fcwt_ref, fcb_ref, out_ref,
                    *, conv_size, num_conv, compute_dtype):
    TB, L, D = x_ref.shape
    C = num_conv
    Wtot = wall_ref.shape[1]                          # sum(conv_size) * C

    # Cast in VMEM (free vs. a wrapper-side XLA convert that costs an extra
    # full HBM pass over x), then one MXU pass computes every (branch, tap)
    # column group of Wall at once.
    x2d = x_ref[...].astype(compute_dtype).reshape(TB * L, D)
    y = jnp.dot(x2d, wall_ref[...],
                preferred_element_type=jnp.float32)   # (TB*L, Wtot) f32 acc
    y = y.reshape(TB, L, Wtot)

    bias = bias_ref[...]                              # (1, n_branch*C) f32

    feats = []
    col = 0
    for bi, K in enumerate(conv_size):                # static unroll (3 branches)
        Lout = L - K + 1
        acc = y[:, 0:Lout, col:col + C]
        col += C
        for k in range(1, K):                         # static unroll (<=3 adds)
            acc = acc + y[:, k:k + Lout, col:col + C]
            col += C
        b = bias[:, bi * C:(bi + 1) * C].reshape(1, 1, C)
        acc = jnp.maximum(acc + b, 0.0)               # F.relu
        feats.append(jnp.max(acc, axis=1))            # max_pool1d over full time
    feat = jnp.concatenate(feats, axis=1)             # (TB, n_branch*C)

    # Dropout(p=0) in the reference module is the identity.
    # fcwt/fcb are zero-padded to 128 lanes -> unmasked, lane-dense store.
    logit = jnp.dot(feat, fcwt_ref[...],
                    preferred_element_type=jnp.float32) + fcb_ref[...]
    out_ref[...] = logit.astype(out_ref.dtype)


def textcnn_forward(x, params, *, conv_size=(2, 3, 4),
                    compute_dtype=None, block_b=None):
    """x: (B, L, D); params: dict of conv/fc weights (PyTorch layout)."""
    B, L, D = x.shape
    C = params[f'w{conv_size[0]}'].shape[0]           # num_conv (out channels)
    O = params['fc_b'].shape[-1]
    assert L >= max(conv_size), "sequence length must be >= max conv kernel size"

    if compute_dtype is None:
        compute_dtype = x.dtype                       # no cast unless asked for

    # ---- wrapper-side layout work (tiny weights only; x is untouched) ----
    # Fold every (branch K, tap k) weight slice into one (D, sum(K)*C) matrix.
    cols = []
    for K in conv_size:
        w = params[f'w{K}']                           # (C, K, D)
        for k in range(K):
            cols.append(w[:, k, :])                   # (C, D)
    wall = jnp.concatenate(cols, axis=0).T.astype(compute_dtype)  # (D, Wtot)
    Wtot = wall.shape[1]

    bias = jnp.concatenate(
        [params[f'b{K}'] for K in conv_size], axis=1).astype(jnp.float32)  # (1, 3C)

    # Lane-dense logits: pad fc output columns to a multiple of 128 so the
    # in-kernel store is an unmasked full-lane vst; sliced back to O outside.
    Opad = max(128, ((O + 127) // 128) * 128)
    fcwt = jnp.zeros((len(conv_size) * C, Opad), jnp.float32)
    fcwt = fcwt.at[:, :O].set(params['fc_w'].T.astype(jnp.float32))
    fcb = jnp.zeros((1, Opad), jnp.float32).at[:, :O].set(
        params['fc_b'].astype(jnp.float32))

    # ---- batch-tile selection: budget *total* VMEM (x double-buffer, the
    # in-kernel compute-dtype copy, the f32 y + epilogue slice copies, the
    # double-buffered output block, resident weights) against ~44 MiB so the
    # kernel fits v7x's 64 MiB per-TC VMEM and still gets 16+ MiB x tiles on
    # v5e/v6e. ----
    x_it = jnp.dtype(x.dtype).itemsize
    c_it = jnp.dtype(compute_dtype).itemsize
    needs_cast = jnp.dtype(compute_dtype) != jnp.dtype(x.dtype)
    per_sample = (2 * L * D * x_it                    # double-buffered x stream
                  + (L * D * c_it if needs_cast else 0)
                  + 3 * L * Wtot * 4                  # f32 y + per-branch acc/slices
                  + 2 * Opad * 4)                     # double-buffered out block
    fixed = int(2 * (wall.size * c_it + bias.size * 4
                     + fcwt.size * 4 + fcb.size * 4) + (2 << 20))
    budget = 44 << 20

    if block_b is None:
        tb = max(1, (budget - fixed) // per_sample)
        # Diminishing returns past a 32 MiB x tile (per-step overhead <~1%).
        tb = min(tb, max(1, (32 << 20) // (L * D * x_it)))
    else:
        tb = block_b
    tb = int(max(1, min(tb, B)))
    # v7x has 2 TensorCores: keep at least 2 batch tiles so the "parallel"
    # batch axis can actually shard across cores.
    if B >= 16 and tb > (B + 1) // 2:
        tb = (B + 1) // 2
    if tb < B:
        tb = max(8, (tb // 8) * 8)                    # sublane-aligned out block
    tb = min(tb, B)
    nb = pl.cdiv(B, tb)                               # ragged last tile: masked DMA

    # vmem_limit from the *final* tb (covers the tb->8 round-up edge case).
    est = (2 * tb * L * D * x_it
           + (tb * L * D * c_it if needs_cast else 0)
           + 3 * tb * L * Wtot * 4
           + 2 * tb * Opad * 4
           + fixed)
    vmem_limit = int(min(max(est + (4 << 20), 16 << 20), 120 << 20))

    cost = pl.CostEstimate(
        flops=2 * B * L * D * Wtot + 2 * B * len(conv_size) * C * Opad,
        transcendentals=0,
        bytes_accessed=int(x.size * x_it + wall.size * c_it + bias.size * 4
                           + fcwt.size * 4 + fcb.size * 4 + B * Opad * 4),
    )

    kernel = functools.partial(_textcnn_kernel,
                               conv_size=tuple(conv_size), num_conv=C,
                               compute_dtype=compute_dtype)

    out = pl.pallas_call(
        kernel,
        out_shape=jax.ShapeDtypeStruct((B, Opad), jnp.float32),
        grid=(nb,),
        in_specs=[
            # x block's last two dims equal the full array dims -> exempt from
            # the (8,128) divisibility rule; no D padding needed.
            pl.BlockSpec((tb, L, D), lambda i: (i, 0, 0)),    # streamed x tiles
            pl.BlockSpec((D, Wtot), lambda i: (0, 0)),        # resident weights
            pl.BlockSpec(bias.shape, lambda i: (0, 0)),
            pl.BlockSpec(fcwt.shape, lambda i: (0, 0)),
            pl.BlockSpec(fcb.shape, lambda i: (0, 0)),
        ],
        out_specs=pl.BlockSpec((tb, Opad), lambda i: (i, 0)),
        compiler_params=pltpu.CompilerParams(
            dimension_semantics=("parallel",),
            vmem_limit_bytes=vmem_limit,
        ),
        cost_estimate=cost,
    )(x, wall, bias, fcwt, fcb)

    return out[:, :O]


def make_params(key, input_dim=32, num_conv=3, conv_size=(2, 3, 4), dim_output=2):
    ks = jax.random.split(key, 2 * len(conv_size) + 2)
    params = {}
    for i, K in enumerate(conv_size):
        fan_in = K * input_dim
        scale = 1.0 / jnp.sqrt(fan_in)
        params[f'w{K}'] = scale * jax.random.normal(
            ks[2 * i], (num_conv, K, input_dim), jnp.float32)
        params[f'b{K}'] = scale * jax.random.normal(
            ks[2 * i + 1], (1, num_conv), jnp.float32)
    in_feat = len(conv_size) * num_conv
    scale = 1.0 / jnp.sqrt(in_feat)
    params['fc_w'] = scale * jax.random.normal(ks[-2], (dim_output, in_feat), jnp.float32)
    params['fc_b'] = scale * jax.random.normal(ks[-1], (1, dim_output), jnp.float32)
    return params


def textcnn_reference(x, params, conv_size=(2, 3, 4)):
    """Pure-JAX reference matching the PyTorch forward."""
    feats = []
    for K in conv_size:
        w, b = params[f'w{K}'], params[f'b{K}']
        Lout = x.shape[1] - K + 1
        acc = sum(jnp.einsum('bld,cd->blc', x[:, k:k + Lout, :], w[:, k, :])
                  for k in range(K)) + b.reshape(1, 1, -1)
        feats.append(jnp.max(jax.nn.relu(acc), axis=1))
    feat = jnp.concatenate(feats, axis=1)
    return feat @ params['fc_w'].T + params['fc_b']


if __name__ == "__main__":
    conv_size = (2, 3, 4)
    key = jax.random.PRNGKey(0)
    kx, kp, kx2 = jax.random.split(key, 3)

    # Small demo shapes (D stands in for production input_dim=768).
    B, L, D = 2, 16, 32
    x = jax.random.normal(kx, (B, L, D), jnp.float32)
    params = make_params(kp, input_dim=D, num_conv=3,
                         conv_size=conv_size, dim_output=2)
    ref = textcnn_reference(x, params, conv_size)

    # f32 path: strict check against the pure-JAX reference.
    out = jax.block_until_ready(textcnn_forward(x, params, conv_size=conv_size))
    assert out.shape == (B, 2)
    assert jnp.allclose(out, ref, atol=1e-4, rtol=1e-4), "f32 mismatch vs reference"

    # Ragged batch tiling (B not a multiple of tb): exercises the masked
    # partial-block DMA path that replaces the old jnp.pad of x.
    B2 = 18
    x2 = jax.random.normal(kx2, (B2, L, D), jnp.float32)
    ref2 = textcnn_reference(x2, params, conv_size)
    out2 = jax.block_until_ready(
        textcnn_forward(x2, params, conv_size=conv_size, block_b=8))
    assert out2.shape == (B2, 2)
    assert jnp.allclose(out2, ref2, atol=1e-4, rtol=1e-4), "ragged-tile mismatch"

    # bf16 matmul path (in-kernel cast: x still streams as f32, 4 B/elem, no
    # wrapper convert pass); accumulation stays f32 -> loose tolerance.
    out_bf16 = jax.block_until_ready(
        textcnn_forward(x, params, conv_size=conv_size,
                        compute_dtype=jnp.bfloat16))
    assert out_bf16.shape == (B, 2)
    assert jnp.allclose(out_bf16, ref, atol=1e-1, rtol=1e-1), "bf16 mismatch vs reference"

    print("KERNEL_OK")
</pallas_src>

<mosaic_0001>
module attributes {stable_mosaic.version = 11 : i64} {
  func.func @_textcnn_kernel(%arg0: i32, %arg1: memref<2x16x32xf32, #tpu.memory_space<vmem>>, %arg2: memref<32x27xf32, #tpu.memory_space<vmem>>, %arg3: memref<1x9xf32, #tpu.memory_space<vmem>>, %arg4: memref<9x128xf32, #tpu.memory_space<vmem>>, %arg5: memref<1x128xf32, #tpu.memory_space<vmem>>, %arg6: memref<2x128xf32, #tpu.memory_space<vmem>>) attributes {dimension_semantics = [#tpu.dimension_semantics<parallel>], iteration_bounds = array<i64: 1>, scalar_prefetch = 0 : i64, scratch_operands = 0 : i64, tpu.core_type = #tpu.core_type<tc>, window_params = [{transform_indices = @transform_0, window_bounds = array<i64: 2, 16, 32>}, {pipeline_mode = #tpu.pipeline_mode<synchronous>, transform_indices = @transform_1, window_bounds = array<i64: 32, 27>}, {pipeline_mode = #tpu.pipeline_mode<synchronous>, transform_indices = @transform_2, window_bounds = array<i64: 1, 9>}, {pipeline_mode = #tpu.pipeline_mode<synchronous>, transform_indices = @transform_3, window_bounds = array<i64: 9, 128>}, {pipeline_mode = #tpu.pipeline_mode<synchronous>, transform_indices = @transform_4, window_bounds = array<i64: 1, 128>}, {transform_indices = @transform_5, window_bounds = array<i64: 2, 128>}]} {
    %c0 = arith.constant 0 : index
    %c0_0 = arith.constant 0 : index
    %c0_1 = arith.constant 0 : index
    %0 = vector.load %arg1[%c0, %c0_0, %c0_1] : memref<2x16x32xf32, #tpu.memory_space<vmem>>, vector<2x16x32xf32>
    %1 = vector.shape_cast %0 : vector<2x16x32xf32> to vector<32x32xf32>
    %c0_2 = arith.constant 0 : index
    %c0_3 = arith.constant 0 : index
    %2 = vector.load %arg2[%c0_2, %c0_3] : memref<32x27xf32, #tpu.memory_space<vmem>>, vector<32x27xf32>
    %cst = arith.constant dense<0.000000e+00> : vector<32x27xf32>
    %3 = tpu.matmul %1, %2, %cst {dimension_numbers = #tpu.dot_dimension_numbers<[1], [0], [0], [1], [0, 0, 1, 1], [], []>} : vector<32x32xf32>, vector<32x27xf32>, vector<32x27xf32> -> vector<32x27xf32>
    %4 = vector.shape_cast %3 : vector<32x27xf32> to vector<2x16x27xf32>
    %c0_4 = arith.constant 0 : index
    %c0_5 = arith.constant 0 : index
    %5 = vector.load %arg3[%c0_4, %c0_5] : memref<1x9xf32, #tpu.memory_space<vmem>>, vector<1x9xf32>
    %6 = vector.extract_strided_slice %4 {offsets = [0, 0, 0], sizes = [2, 15, 3], strides = [1, 1, 1]} : vector<2x16x27xf32> to vector<2x15x3xf32>
    %7 = vector.extract_strided_slice %4 {offsets = [0, 1, 3], sizes = [2, 15, 3], strides = [1, 1, 1]} : vector<2x16x27xf32> to vector<2x15x3xf32>
    %8 = arith.addf %6, %7 : vector<2x15x3xf32>
    %9 = vector.extract_strided_slice %5 {offsets = [0, 0], sizes = [1, 3], strides = [1, 1]} : vector<1x9xf32> to vector<1x3xf32>
    %10 = vector.shape_cast %9 : vector<1x3xf32> to vector<1x1x3xf32>
    %11 = vector.broadcast %10 : vector<1x1x3xf32> to vector<2x15x3xf32>
    %12 = arith.addf %8, %11 : vector<2x15x3xf32>
    %cst_6 = arith.constant 0.000000e+00 : f32
    %13 = vector.broadcast %cst_6 : f32 to vector<2x15x3xf32>
    %14 = arith.maximumf %12, %13 : vector<2x15x3xf32>
    %cst_7 = arith.constant dense<0xFF800000> : vector<2x3xf32>
    %15 = vector.multi_reduction <maximumf>, %14, %cst_7 [1] : vector<2x15x3xf32> to vector<2x3xf32>
    %16 = vector.extract_strided_slice %4 {offsets = [0, 0, 6], sizes = [2, 14, 3], strides = [1, 1, 1]} : vector<2x16x27xf32> to vector<2x14x3xf32>
    %17 = vector.extract_strided_slice %4 {offsets = [0, 1, 9], sizes = [2, 14, 3], strides = [1, 1, 1]} : vector<2x16x27xf32> to vector<2x14x3xf32>
    %18 = arith.addf %16, %17 : vector<2x14x3xf32>
    %19 = vector.extract_strided_slice %4 {offsets = [0, 2, 12], sizes = [2, 14, 3], strides = [1, 1, 1]} : vector<2x16x27xf32> to vector<2x14x3xf32>
    %20 = arith.addf %18, %19 : vector<2x14x3xf32>
    %21 = vector.extract_strided_slice %5 {offsets = [0, 3], sizes = [1, 3], strides = [1, 1]} : vector<1x9xf32> to vector<1x3xf32>
    %22 = vector.shape_cast %21 : vector<1x3xf32> to vector<1x1x3xf32>
    %23 = vector.broadcast %22 : vector<1x1x3xf32> to vector<2x14x3xf32>
    %24 = arith.addf %20, %23 : vector<2x14x3xf32>
    %cst_8 = arith.constant 0.000000e+00 : f32
    %25 = vector.broadcast %cst_8 : f32 to vector<2x14x3xf32>
    %26 = arith.maximumf %24, %25 : vector<2x14x3xf32>
    %cst_9 = arith.constant dense<0xFF800000> : vector<2x3xf32>
    %27 = vector.multi_reduction <maximumf>, %26, %cst_9 [1] : vector<2x14x3xf32> to vector<2x3xf32>
    %28 = vector.extract_strided_slice %4 {offsets = [0, 0, 15], sizes = [2, 13, 3], strides = [1, 1, 1]} : vector<2x16x27xf32> to vector<2x13x3xf32>
    %29 = vector.extract_strided_slice %4 {offsets = [0, 1, 18], sizes = [2, 13, 3], strides = [1, 1, 1]} : vector<2x16x27xf32> to vector<2x13x3xf32>
    %30 = arith.addf %28, %29 : vector<2x13x3xf32>
    %31 = vector.extract_strided_slice %4 {offsets = [0, 2, 21], sizes = [2, 13, 3], strides = [1, 1, 1]} : vector<2x16x27xf32> to vector<2x13x3xf32>
    %32 = arith.addf %30, %31 : vector<2x13x3xf32>
    %33 = vector.extract_strided_slice %4 {offsets = [0, 3, 24], sizes = [2, 13, 3], strides = [1, 1, 1]} : vector<2x16x27xf32> to vector<2x13x3xf32>
    %34 = arith.addf %32, %33 : vector<2x13x3xf32>
    %35 = vector.extract_strided_slice %5 {offsets = [0, 6], sizes = [1, 3], strides = [1, 1]} : vector<1x9xf32> to vector<1x3xf32>
    %36 = vector.shape_cast %35 : vector<1x3xf32> to vector<1x1x3xf32>
    %37 = vector.broadcast %36 : vector<1x1x3xf32> to vector<2x13x3xf32>
    %38 = arith.addf %34, %37 : vector<2x13x3xf32>
    %cst_10 = arith.constant 0.000000e+00 : f32
    %39 = vector.broadcast %cst_10 : f32 to vector<2x13x3xf32>
    %40 = arith.maximumf %38, %39 : vector<2x13x3xf32>
    %cst_11 = arith.constant dense<0xFF800000> : vector<2x3xf32>
    %41 = vector.multi_reduction <maximumf>, %40, %cst_11 [1] : vector<2x13x3xf32> to vector<2x3xf32>
    %42 = tpu.concatenate %15, %27, %41 in 1 : vector<2x3xf32>, vector<2x3xf32>, vector<2x3xf32> -> vector<2x9xf32>
    %c0_12 = arith.constant 0 : index
    %c0_13 = arith.constant 0 : index
    %43 = vector.load %arg4[%c0_12, %c0_13] : memref<9x128xf32, #tpu.memory_space<vmem>>, vector<9x128xf32>
    %cst_14 = arith.constant dense<0.000000e+00> : vector<2x128xf32>
    %44 = tpu.matmul %42, %43, %cst_14 {dimension_numbers = #tpu.dot_dimension_numbers<[1], [0], [0], [1], [0, 0, 1, 1], [], []>} : vector<2x9xf32>, vector<9x128xf32>, vector<2x128xf32> -> vector<2x128xf32>
    %c0_15 = arith.constant 0 : index
    %c0_16 = arith.constant 0 : index
    %45 = vector.load %arg5[%c0_15, %c0_16] : memref<1x128xf32, #tpu.memory_space<vmem>>, vector<1x128xf32>
    %46 = vector.broadcast %45 : vector<1x128xf32> to vector<2x128xf32>
    %47 = arith.addf %44, %46 : vector<2x128xf32>
    %c0_17 = arith.constant 0 : index
    %c0_18 = arith.constant 0 : index
    %48 = vector.load %arg6[%c0_17, %c0_18] : memref<2x128xf32, #tpu.memory_space<vmem>>, vector<2x128xf32>
    tpu.vector_store %arg6[%c0_17, %c0_18], %47 {strides = array<i32>} : memref<2x128xf32, #tpu.memory_space<vmem>>, vector<2x128xf32>,
    return
  }
  func.func @transform_0(%arg0: i32) -> (i32, i32, i32) {
    %c0_i32 = arith.constant 0 : i32
    %c0_i32_0 = arith.constant 0 : i32
    %c0_i32_1 = arith.constant 0 : i32
    return %arg0, %c0_i32, %c0_i32_0 : i32, i32, i32
  }
  func.func @transform_1(%arg0: i32) -> (i32, i32) {
    %c0_i32 = arith.constant 0 : i32
    %c0_i32_0 = arith.constant 0 : i32
    %c0_i32_1 = arith.constant 0 : i32
    return %c0_i32, %c0_i32_0 : i32, i32
  }
  func.func @transform_2(%arg0: i32) -> (i32, i32) {
    %c0_i32 = arith.constant 0 : i32
    %c0_i32_0 = arith.constant 0 : i32
    %c0_i32_1 = arith.constant 0 : i32
    return %c0_i32, %c0_i32_0 : i32, i32
  }
  func.func @transform_3(%arg0: i32) -> (i32, i32) {
    %c0_i32 = arith.constant 0 : i32
    %c0_i32_0 = arith.constant 0 : i32
    %c0_i32_1 = arith.constant 0 : i32
    return %c0_i32, %c0_i32_0 : i32, i32
  }
  func.func @transform_4(%arg0: i32) -> (i32, i32) {
    %c0_i32 = arith.constant 0 : i32
    %c0_i32_0 = arith.constant 0 : i32
    %c0_i32_1 = arith.constant 0 : i32
    return %c0_i32, %c0_i32_0 : i32, i32
  }
  func.func @transform_5(%arg0: i32) -> (i32, i32) {
    %c0_i32 = arith.constant 0 : i32
    %c0_i32_0 = arith.constant 0 : i32
    return %arg0, %c0_i32 : i32, i32
  }
}

</mosaic_0001>

<llo_original>
// kernel: tpu_custom_call.1
$region0: #{tpu_custom_call.1}
  #allocation0 [shape = 'u32[]', space=smem, size = 0x4, offset = 0x4, fixed_abs, tag = 'smem constant byte address 0x4 - core index']
  #allocation1 [shape = 'u32[144,128]{1,0:T(1,128)}', space=vmem, size = 0x12000, scoped, tag = 'internal scratch']
  %s0 = inlined_call_operand.hbm [shape: f32[2,16,32], index: 0, kind: input, shape index: {}]
  %s1 = inlined_call_operand.hbm [shape: f32[32,27], index: 1, kind: input, shape index: {}]
  %s2 = inlined_call_operand.vmem [shape: f32[1,9], index: 2, kind: input, shape index: {}]
  %s3 = inlined_call_operand.hbm [shape: f32[9,128], index: 3, kind: input, shape index: {}]
  %s4 = inlined_call_operand.vmem [shape: f32[1,128], index: 4, kind: input, shape index: {}]
  %s5 = inlined_call_operand.hbm [shape: f32[2,128], index: 5, kind: output, shape index: {}]
  %s6 = sld [smem:[#allocation0]]
  $region42: #{tpu_custom_call.1} parent=0
    _
  %s8 = ssub.s32 1, %s6
  %s9 = scalar_select 0, %s8, %s6
  $region1: #{tpu_custom_call.1} parent=0
    #allocation2 [shape = 'u8[16384]{0}', space=vmem, size = 0x4000, scoped, tag = 'input window, operand 0, single buffered']
    #allocation3 [shape = 's32[1]{0}', space=sflag, size = 0x4, scoped, tag = 'scoped memory for tpu_custom_call.1']
    #allocation4 [shape = 's32[1]{0}', space=sflag, size = 0x4, scoped, tag = 'scoped memory for tpu_custom_call.1']
    #allocation5 [shape = 'u8[16384]{0}', space=vmem, size = 0x4000, scoped, tag = 'input window, operand 1, single buffered']
    #allocation6 [shape = 's32[1]{0}', space=sflag, size = 0x4, scoped, tag = 'scoped memory for tpu_custom_call.1']
    #allocation7 [shape = 'u8[8192]{0}', space=vmem, size = 0x2000, scoped, tag = 'input window, operand 3, single buffered']
    #allocation8 [shape = 'u8[1024]{0}', space=vmem, size = 0x400, scoped, tag = 'output window, operand 0, single buffered']
    %10 = vsyncpa [#allocation3], 0
    %11 = vsyncpa [#allocation6], 0
    %12 = vsyncpa [#allocation4], 0
    // Predicated region
    $region2: #{tpu_custom_call.1} parent=1 // pred_check
      _
    $region3: #{tpu_custom_call.1} parent=1 // pred_check_branch
      %14 = sbr.rel (0) target = $region5
    $region4: #{tpu_custom_call.1} parent=1 // pred_region
      %s16 = ssub.s32 512, 512
      %17 = vsyncadd [#allocation3], %s16
      %s18 = sshll.u32 [#allocation2], 4
      %s19 = int_to_ptr.vmem [resolvable:$true] %s18
      %24 = dma.hbm_to_vmem [thread:$0]  %s0, 512, %s19, [#allocation3], 128, 128, 8
    $region5: #{tpu_custom_call.1} parent=1 // pred_fallthru
      _
    // Predicated region
    $region6: #{tpu_custom_call.1} parent=1 // pred_check
      _
    $region7: #{tpu_custom_call.1} parent=1 // pred_check_branch
      %26 = sbr.rel (0) target = $region9
    $region8: #{tpu_custom_call.1} parent=1 // pred_region
      %s28 = ssub.s32 512, 512
      %29 = vsyncadd [#allocation6], %s28
      %s30 = sshll.u32 [#allocation5], 4
      %s31 = int_to_ptr.vmem [resolvable:$true] %s30
      %36 = dma.hbm_to_vmem [thread:$0]  %s1, 512, %s31, [#allocation6], 128, 128, 8
    $region9: #{tpu_custom_call.1} parent=1 // pred_fallthru
      _
    // Predicated region
    $region10: #{tpu_custom_call.1} parent=1 // pred_check
      _
    $region11: #{tpu_custom_call.1} parent=1 // pred_check_branch
      %38 = sbr.rel (0) target = $region13
    $region12: #{tpu_custom_call.1} parent=1 // pred_region
      _
    $region13: #{tpu_custom_call.1} parent=1 // pred_fallthru
      _
    // Predicated region
    $region14: #{tpu_custom_call.1} parent=1 // pred_check
      _
    $region15: #{tpu_custom_call.1} parent=1 // pred_check_branch
      %40 = sbr.rel (0) target = $region17
    $region16: #{tpu_custom_call.1} parent=1 // pred_region
      %s42 = ssub.s32 256, 256
      %43 = vsyncadd [#allocation6], %s42
      %s44 = sshll.u32 [#allocation7], 4
      %s45 = int_to_ptr.vmem [resolvable:$true] %s44
      %50 = dma.hbm_to_vmem [thread:$0]  %s3, 256, %s45, [#allocation6], 128, 128, 8
    $region17: #{tpu_custom_call.1} parent=1 // pred_fallthru
      _
    // Predicated region
    $region18: #{tpu_custom_call.1} parent=1 // pred_check
      _
    $region19: #{tpu_custom_call.1} parent=1 // pred_check_branch
      %52 = sbr.rel (0) target = $region21
    $region20: #{tpu_custom_call.1} parent=1 // pred_region
      _
    $region21: #{tpu_custom_call.1} parent=1 // pred_fallthru
      _
    // Predicated region
    $region22: #{tpu_custom_call.1} parent=1 // pred_check
      _
    $region23: #{tpu_custom_call.1} parent=1 // pred_check_branch
      %54 = sbr.rel (0) target = $region25
    $region24: #{tpu_custom_call.1} parent=1 // pred_region
      %55 = dma.done [#allocation3], 512
    $region25: #{tpu_custom_call.1} parent=1 // pred_fallthru
      _
    // Predicated region
    $region26: #{tpu_custom_call.1} parent=1 // pred_check
      _
    $region27: #{tpu_custom_call.1} parent=1 // pred_check_branch
      %57 = sbr.rel (0) target = $region29
    $region28: #{tpu_custom_call.1} parent=1 // pred_region
      %58 = dma.done [#allocation6], 512
    $region29: #{tpu_custom_call.1} parent=1 // pred_fallthru
      _
    // Predicated region
    $region30: #{tpu_custom_call.1} parent=1 // pred_check
      _
    $region31: #{tpu_custom_call.1} parent=1 // pred_check_branch
      %60 = sbr.rel (0) target = $region33
    $region32: #{tpu_custom_call.1} parent=1 // pred_region
      %61 = dma.done [#allocation6], 256
    $region33: #{tpu_custom_call.1} parent=1 // pred_fallthru
      _
    %v62 = vld [vmem:[#allocation2] sm:$0xff]
    %v63 = vld [vmem:[#allocation2 + $0x8] sm:$0xff]
    %v64 = vld [vmem:[#allocation2 + $0x10] sm:$0xff]
    %v65 = vld [vmem:[#allocation2 + $0x18] sm:$0xff]
    %v66 = vld [vmem:[#allocation5] sm:$0xff]
    %v67 = vld [vmem:[#allocation5 + $0x8] sm:$0xff]
    %v68 = vld [vmem:[#allocation5 + $0x10] sm:$0xff]
    %v69 = vld [vmem:[#allocation5 + $0x18] sm:$0xff]
    %vm70 = vcmask 261120
    %v72 = vsel %vm70, %v62, 0
    %v75 = vsel %vm70, %v63, 0
    %v78 = vsel %vm70, %v64, 0
    %v81 = vsel %vm70, %v65, 0
    %83 = vmatprep.subr.mxu0 0.0
    %84 = vmatpush1.msra.mxu0 %v66
    %85 = vmatprep.subr.mxu0 0.0
    %86 = vmatpush1.msra.mxu0 %v67
    %87 = vmatprep.subr.mxu0 0.0
    %88 = vmatpush1.msra.mxu0 %v68
    %89 = vmatprep.subr.mxu0 0.0
    %90 = vmatpush1.msra.mxu0 %v69
    %91 = vmatprep.subr.mxu0 0.0
    %92 = vmatpush1.msra.mxu0 0.0
    %93 = vmatprep.subr.mxu0 0.0
    %94 = vmatpush1.msra.mxu0 0.0
    %95 = vmatprep.subr.mxu0 0.0
    %96 = vmatpush1.msra.mxu0 0.0
    %97 = vmatprep.subr.mxu0 0.0
    %98 = vmatpush1.msra.mxu0 0.0
    %99 = vmatprep.subr.mxu0 0.0
    %100 = vmatpush1.msra.mxu0 0.0
    %101 = vmatprep.subr.mxu0 0.0
    %102 = vmatpush1.msra.mxu0 0.0
    %103 = vmatprep.subr.mxu0 0.0
    %104 = vmatpush1.msra.mxu0 0.0
    %105 = vmatprep.subr.mxu0 0.0
    %106 = vmatpush1.msra.mxu0 0.0
    %107 = vmatprep.subr.mxu0 0.0
    %108 = vmatpush1.msra.mxu0 0.0
    %109 = vmatprep.subr.mxu0 0.0
    %110 = vmatpush1.msra.mxu0 0.0
    %111 = vmatprep.subr.mxu0 0.0
    %112 = vmatpush1.msra.mxu0 0.0
    %113 = vmatprep.subr.mxu0 0.0
    %114 = vmatpush1.msra.mxu0 0.0
    %115 = vmatprep.subr.mxu0 0.0
    %116 = vmatpush1.msra.mxu0 0.0
    %117 = vmatprep.subr.mxu0 0.0
    %118 = vmatpush1.msra.mxu0 0.0
    %119 = vmatprep.subr.mxu0 0.0
    %120 = vmatpush1.msra.mxu0 0.0
    %121 = vmatprep.subr.mxu0 0.0
    %122 = vmatpush1.msra.mxu0 0.0
    %123 = vmatprep.subr.mxu0 0.0
    %124 = vmatpush1.msra.mxu0 0.0
    %125 = vmatprep.subr.mxu0 0.0
    %126 = vmatpush1.msra.mxu0 0.0
    %127 = vmatprep.subr.mxu0 0.0
    %128 = vmatpush1.msra.mxu0 0.0
    %129 = vmatprep.subr.mxu0 0.0
    %130 = vmatpush1.msra.mxu0 0.0
    %131 = vmatprep.subr.mxu0 0.0
    %132 = vmatpush1.msra.mxu0 0.0
    %133 = vmatprep.subr.mxu0 0.0
    %134 = vmatpush1.msra.mxu0 0.0
    %135 = vmatprep.subr.mxu0 0.0
    %136 = vmatpush1.msra.mxu0 0.0
    %137 = vmatprep.subr.mxu0 0.0
    %138 = vmatpush1.msra.mxu0 0.0
    %139 = vmatprep.subr.mxu0 0.0
    %140 = vmatpush1.msra.mxu0 0.0
    %141 = vmatprep.subr.mxu0 0.0
    %142 = vmatpush1.msra.mxu0 0.0
    %143 = vmatprep.subr.mxu0 0.0
    %144 = vmatpush1.msra.mxu0 0.0
    %145 = vmatprep.subr.mxu0 0.0
    %146 = vmatpush1.msra.mxu0 0.0
    %147 = vmatprep.mubr.f32.mxu0 0.0
    %148 = vmatmul.mubr.f32.gmra.mrb[0].mxu0 %v72
    %v149 = vpop.f32.mrb[0].mxu0
    %v150 = vadd.f32 0.0, %v149
    %v151 = vpop.f32.mrb[0].mxu0
    %152 = vmatprep.mubr.f32.mxu0 0.0
    %153 = vmatmul.mubr.f32.gmra.mrb[0].mxu0 %v75
    %v154 = vpop.f32.mrb[0].mxu0
    %v155 = vadd.f32 0.0, %v154
    %v156 = vpop.f32.mrb[0].mxu0
    %157 = vmatprep.mubr.f32.mxu0 0.0
    %158 = vmatmul.mubr.f32.gmra.mrb[0].mxu0 %v78
    %v159 = vpop.f32.mrb[0].mxu0
    %v160 = vadd.f32 0.0, %v159
    %v161 = vpop.f32.mrb[0].mxu0
    %162 = vmatprep.mubr.f32.mxu0 0.0
    %163 = vmatmul.mubr.f32.gmra.mrb[0].mxu0 %v81
    %v164 = vpop.f32.mrb[0].mxu0
    %v165 = vadd.f32 0.0, %v164
    %v166 = vpop.f32.mrb[0].mxu0
    %167 = vdwg.mxu0
    %v168 = vld [vmem:[%s2] sm:$0x1]
    %vm173 = vcmask 1046528
    %v174 = vrot.slane %v150, 1
    %v175 = vrot.slane %v155, 1
    %v176 = vsel %vm173, %v174, %v175
    %v177 = vrot.slane %v160, 1
    %v178 = vrot.slane %v165, 1
    %v179 = vsel %vm173, %v177, %v178
    %180 = vrot.lane.b32.xlu0 %v176, 125
    %v181 = vpop.permute.xlu0 %180
    %182 = vrot.lane.b32.xlu0 %v175, 125
    %v183 = vpop.permute.xlu0 %182
    %184 = vrot.lane.b32.xlu0 %v179, 125
    %v185 = vpop.permute.xlu0 %184
    %186 = vrot.lane.b32.xlu0 %v178, 125
    %v187 = vpop.permute.xlu0 %186
    %v192 = vadd.f32 %v150, %v181
    %v193 = vadd.f32 %v155, %v183
    %v194 = vadd.f32 %v160, %v185
    %v195 = vadd.f32 %v165, %v187
    %v197 = vlaneseq
    %v198 = vshrl.u32 %v197, 7
    %v199 = vsub.s32 0, %v198
    %v200 = vrot.slane %v168, %v199
    %v202 = vadd.f32 %v192, %v200
    %v203 = vadd.f32 %v193, %v200
    %v204 = vadd.f32 %v194, %v200
    %v205 = vadd.f32 %v195, %v200
    %v206 = vmax.f32 %v202, 0.0
    %v207 = vmax.f32 %v203, 0.0
    %v208 = vmax.f32 %v204, 0.0
    %v209 = vmax.f32 %v205, 0.0
    %vm210 = vcmask 23552
    %v211 = vsel %vm210, %v206, -inf
    %vm212 = vcmask 22528
    %v213 = vsel %vm212, %v207, -inf
    %v214 = vmax.f32 %v211, %v213
    %v215 = vrot.slane %v214, 4
    %v216 = vmax.f32 %v214, %v215
    %v217 = vrot.slane %v216, 2
    %v218 = vmax.f32 %v216, %v217
    %v219 = vrot.slane %v218, 1
    %v220 = vmax.f32 %v218, %v219
    %v221 = vsel %vm210, %v208, -inf
    %v222 = vsel %vm212, %v209, -inf
    %v223 = vmax.f32 %v221, %v222
    %v224 = vrot.slane %v223, 4
    %v225 = vmax.f32 %v223, %v224
    %v226 = vrot.slane %v225, 2
    %v227 = vmax.f32 %v225, %v226
    %v228 = vrot.slane %v227, 1
    %v229 = vmax.f32 %v227, %v228
    %vm230 = vcmask 1045504
    %v231 = vrot.slane %v150, 2
    %v232 = vrot.slane %v155, 2
    %v233 = vsel %vm230, %v231, %v232
    %v234 = vrot.slane %v160, 2
    %v235 = vrot.slane %v165, 2
    %v236 = vsel %vm230, %v234, %v235
    %237 = vrot.lane.b32.xlu0 %v233, 122
    %v238 = vpop.permute.xlu0 %237
    %239 = vrot.lane.b32.xlu0 %v232, 122
    %v240 = vpop.permute.xlu0 %239
    %241 = vrot.lane.b32.xlu0 %v236, 122
    %v242 = vpop.permute.xlu0 %241
    %243 = vrot.lane.b32.xlu0 %v235, 122
    %v244 = vpop.permute.xlu0 %243
    %v249 = vadd.f32 %v192, %v238
    %v250 = vadd.f32 %v193, %v240
    %v251 = vadd.f32 %v194, %v242
    %v252 = vadd.f32 %v195, %v244
    %253 = vrot.lane.b32.xlu0 %v200, 3
    %v254 = vpop.permute.xlu0 %253
    %v256 = vadd.f32 %v249, %v254
    %v257 = vadd.f32 %v250, %v254
    %v258 = vadd.f32 %v251, %v254
    %v259 = vadd.f32 %v252, %v254
    %v260 = vmax.f32 %v256, 0.0
    %v261 = vmax.f32 %v257, 0.0
    %v262 = vmax.f32 %v258, 0.0
    %v263 = vmax.f32 %v259, 0.0
    %vm264 = vcmask 72752
    %v265 = vsel %vm264, %v260, -inf
    %vm266 = vcmask 70704
    %v267 = vsel %vm266, %v261, -inf
    %v268 = vmax.f32 %v265, %v267
    %v269 = vrot.slane %v268, 4
    %v270 = vmax.f32 %v268, %v269
    %v271 = vrot.slane %v270, 2
    %v272 = vmax.f32 %v270, %v271
    %v273 = vrot.slane %v272, 1
    %v274 = vmax.f32 %v272, %v273
    %v275 = vsel %vm264, %v262, -inf
    %v276 = vsel %vm266, %v263, -inf
    %v277 = vmax.f32 %v275, %v276
    %v278 = vrot.slane %v277, 4
    %v279 = vmax.f32 %v277, %v278
    %v280 = vrot.slane %v279, 2
    %v281 = vmax.f32 %v279, %v280
    %v282 = vrot.slane %v281, 1
    %v283 = vmax.f32 %v281, %v282
    %vm284 = vcmask 1044480
    %v285 = vrot.slane %v150, 3
    %v286 = vrot.slane %v155, 3
    %v287 = vsel %vm284, %v285, %v286
    %v288 = vrot.slane %v160, 3
    %v289 = vrot.slane %v165, 3
    %v290 = vsel %vm284, %v288, %v289
    %291 = vrot.lane.b32.xlu0 %v287, 119
    %v292 = vpop.permute.xlu0 %291
    %293 = vrot.lane.b32.xlu0 %v286, 119
    %v294 = vpop.permute.xlu0 %293
    %295 = vrot.lane.b32.xlu0 %v290, 119
    %v296 = vpop.permute.xlu0 %295
    %297 = vrot.lane.b32.xlu0 %v289, 119
    %v298 = vpop.permute.xlu0 %297
    %v303 = vadd.f32 %v249, %v292
    %v304 = vadd.f32 %v250, %v294
    %v305 = vadd.f32 %v251, %v296
    %v306 = vadd.f32 %v252, %v298
    %307 = vrot.lane.b32.xlu0 %v200, 9
    %v308 = vpop.permute.xlu0 %307
    %v310 = vadd.f32 %v303, %v308
    %v311 = vadd.f32 %v304, %v308
    %v312 = vadd.f32 %v305, %v308
    %v313 = vadd.f32 %v306, %v308
    %v314 = vmax.f32 %v310, 0.0
    %v315 = vmax.f32 %v311, 0.0
    %v316 = vmax.f32 %v312, 0.0
    %v317 = vmax.f32 %v313, 0.0
    %vm318 = vcmask 146552
    %v319 = vsel %vm318, %v314, -inf
    %vm320 = vcmask 143480
    %v321 = vsel %vm320, %v315, -inf
    %v322 = vmax.f32 %v319, %v321
    %v323 = vrot.slane %v322, 4
    %v324 = vmax.f32 %v322, %v323
    %v325 = vrot.slane %v324, 2
    %v326 = vmax.f32 %v324, %v325
    %v327 = vrot.slane %v326, 1
    %v328 = vmax.f32 %v326, %v327
    %v329 = vsel %vm318, %v316, -inf
    %v330 = vsel %vm320, %v317, -inf
    %v331 = vmax.f32 %v329, %v330
    %v332 = vrot.slane %v331, 4
    %v333 = vmax.f32 %v331, %v332
    %v334 = vrot.slane %v333, 2
    %v335 = vmax.f32 %v333, %v334
    %v336 = vrot.slane %v335, 1
    %v337 = vmax.f32 %v335, %v336
    %vm340 = vcmask 1041409
    %v341 = vsel %vm340, %v229, %v220
    %v345 = vsel %vm340, %v283, %v274
    %346 = vrot.lane.b32.xlu0 %v345, 125
    %v347 = vpop.permute.xlu0 %346
    %v351 = vsel %vm340, %v337, %v328
    %352 = vrot.lane.b32.xlu0 %v351, 119
    %v353 = vpop.permute.xlu0 %352
    %v355 = vsel %vm210, %v341, %v347
    %vm356 = vcmask 48128
    %v357 = vsel %vm356, %v355, %v353
    %v358 = vld [vmem:[#allocation7] sm:$0xff]
    %v359 = vld [vmem:[#allocation7 + $0x8] sm:$0x1]
    %v360 = vld [vmem:[%s4] sm:$0x1]
    %v362 = vlaneseq
    %v363 = vshrl.u32 %v362, 7
    %v364 = vsub.s32 0, %v363
    %v365 = vrot.slane %v360, %v364
    %vm367 = vcmask 72704
    %v369 = vsel %vm367, %v357, 0
    %vm371 = vcmask 1040384
    %v373 = vsel %vm371, %v359, 0
    %375 = vmatprep.subr.mxu0 0.0
    %376 = vmatpush1.msra.mxu0 %v358
    %377 = vmatprep.subr.mxu0 0.0
    %378 = vmatpush1.msra.mxu0 %v373
    %379 = vmatprep.subr.mxu0 0.0
    %380 = vmatpush1.msra.mxu0 0.0
    %381 = vmatprep.subr.mxu0 0.0
    %382 = vmatpush1.msra.mxu0 0.0
    %383 = vmatprep.subr.mxu0 0.0
    %384 = vmatpush1.msra.mxu0 0.0
    %385 = vmatprep.subr.mxu0 0.0
    %386 = vmatpush1.msra.mxu0 0.0
    %387 = vmatprep.subr.mxu0 0.0
    %388 = vmatpush1.msra.mxu0 0.0
    %389 = vmatprep.subr.mxu0 0.0
    %390 = vmatpush1.msra.mxu0 0.0
    %391 = vmatprep.subr.mxu0 0.0
    %392 = vmatpush1.msra.mxu0 0.0
    %393 = vmatprep.subr.mxu0 0.0
    %394 = vmatpush1.msra.mxu0 0.0
    %395 = vmatprep.subr.mxu0 0.0
    %396 = vmatpush1.msra.mxu0 0.0
    %397 = vmatprep.subr.mxu0 0.0
    %398 = vmatpush1.msra.mxu0 0.0
    %399 = vmatprep.subr.mxu0 0.0
    %400 = vmatpush1.msra.mxu0 0.0
    %401 = vmatprep.subr.mxu0 0.0
    %402 = vmatpush1.msra.mxu0 0.0
    %403 = vmatprep.subr.mxu0 0.0
    %404 = vmatpush1.msra.mxu0 0.0
    %405 = vmatprep.subr.mxu0 0.0
    %406 = vmatpush1.msra.mxu0 0.0
    %407 = vmatprep.subr.mxu0 0.0
    %408 = vmatpush1.msra.mxu0 0.0
    %409 = vmatprep.subr.mxu0 0.0
    %410 = vmatpush1.msra.mxu0 0.0
    %411 = vmatprep.subr.mxu0 0.0
    %412 = vmatpush1.msra.mxu0 0.0
    %413 = vmatprep.subr.mxu0 0.0
    %414 = vmatpush1.msra.mxu0 0.0
    %415 = vmatprep.subr.mxu0 0.0
    %416 = vmatpush1.msra.mxu0 0.0
    %417 = vmatprep.subr.mxu0 0.0
    %418 = vmatpush1.msra.mxu0 0.0
    %419 = vmatprep.subr.mxu0 0.0
    %420 = vmatpush1.msra.mxu0 0.0
    %421 = vmatprep.subr.mxu0 0.0
    %422 = vmatpush1.msra.mxu0 0.0
    %423 = vmatprep.subr.mxu0 0.0
    %424 = vmatpush1.msra.mxu0 0.0
    %425 = vmatprep.subr.mxu0 0.0
    %426 = vmatpush1.msra.mxu0 0.0
    %427 = vmatprep.subr.mxu0 0.0
    %428 = vmatpush1.msra.mxu0 0.0
    %429 = vmatprep.subr.mxu0 0.0
    %430 = vmatpush1.msra.mxu0 0.0
    %431 = vmatprep.subr.mxu0 0.0
    %432 = vmatpush1.msra.mxu0 0.0
    %433 = vmatprep.subr.mxu0 0.0
    %434 = vmatpush1.msra.mxu0 0.0
    %435 = vmatprep.subr.mxu0 0.0
    %436 = vmatpush1.msra.mxu0 0.0
    %437 = vmatprep.subr.mxu0 0.0
    %438 = vmatpush1.msra.mxu0 0.0
    %439 = vmatprep.mubr.f32.mxu0 0.0
    %440 = vmatmul.mubr.f32.gmra.mrb[0].mxu0 %v369
    %v441 = vpop.f32.mrb[0].mxu0
    %v442 = vadd.f32 %v365, %v441
    %v443 = vpop.f32.mrb[0].mxu0
    %444 = vdwg.mxu0
    %445 = vst [vmem:[#allocation8] sm:$0x3] %v442
    // Predicated region
    $region34: #{tpu_custom_call.1} parent=1 // pred_check
      _
    $region35: #{tpu_custom_call.1} parent=1 // pred_check_branch
      %447 = sbr.rel (0) target = $region37
    $region36: #{tpu_custom_call.1} parent=1 // pred_region
      %s449 = ssub.s32 32, 32
      %450 = vsyncadd [#allocation4], %s449
      %s452 = sshll.u32 [#allocation8], 4
      %s453 = int_to_ptr.vmem [resolvable:$true] %s452
      %455 = dma.vmem_to_hbm [thread:$0]  %s453, 32, %s5, [#allocation4]
    $region37: #{tpu_custom_call.1} parent=1 // pred_fallthru
      _
    // Predicated region
    $region38: #{tpu_custom_call.1} parent=1 // pred_check
      _
    $region39: #{tpu_custom_call.1} parent=1 // pred_check_branch
      %457 = sbr.rel (0) target = $region41
    $region40: #{tpu_custom_call.1} parent=1 // pred_region
      %458 = dma.done [#allocation4], 32
    $region41: #{tpu_custom_call.1} parent=1 // pred_fallthru
      _
    %459 = vsyncpa [#allocation3], 1
    %460 = vsyncpa [#allocation6], 1
    %461 = vsyncpa [#allocation4], 1

</llo_original>
